<compile_context>
chip_gen: v7x
topology: tpu7x:2x2x1
jax: 0.10.0
libtpu: 0.0.40
codegen_flags: <defaults>
</compile_context>

<pallas_src>
import functools

import jax
import jax.numpy as jnp
import numpy as np
from jax.experimental import pallas as pl
from jax.experimental.pallas import tpu as pltpu

LN_EPS = 1e-5      # PyTorch nn.LayerNorm default
HIDDEN1 = 256
HIDDEN2 = 128
OUT_PAD = 128      # lane-dense output slab width (>= 1 + 2*action_space)


def _round_up(n, m):
    return ((n + m - 1) // m) * m


def _layer_norm_fused(h, gamma, beta, d):
    # Single-pass statistics: the two reductions are independent (overlap on the
    # XLU), and gamma * rsqrt(var + eps) is folded into one scale.
    inv_d = 1.0 / float(d)
    s1 = jnp.sum(h, axis=-1, keepdims=True)
    s2 = jnp.sum(h * h, axis=-1, keepdims=True)
    mean = s1 * inv_d
    var = s2 * inv_d - mean * mean
    scale = gamma * jax.lax.rsqrt(var + LN_EPS)          # [B, D] via broadcast
    return h * scale + (beta - mean * scale)


def actor_critic_kernel(x_ref, w1_ref, ln1_ref, w2_ref, ln2_ref, wh_ref, bh_ref,
                        out_ref, *, action_space):
    wdt = w1_ref.dtype                      # f32, or bf16 if packed that way
    x = x_ref[...].astype(wdt)              # [tm, num_inputs]

    # linear1 (+bias from packed row 0) -> layer_norm1 -> relu
    h1 = jnp.dot(x, w1_ref[...], preferred_element_type=jnp.float32)
    h1 = h1 + ln1_ref[0:1, :]
    h1 = _layer_norm_fused(h1, ln1_ref[1:2, :], ln1_ref[2:3, :], HIDDEN1)
    h1 = jnp.maximum(h1, 0.0)

    # (x.view(-1, 256) is a no-op for [B, 256] activations)
    # linear2 -> layer_norm2 -> relu
    h2 = jnp.dot(h1.astype(wdt), w2_ref[...], preferred_element_type=jnp.float32)
    h2 = h2 + ln2_ref[0:1, :]
    h2 = _layer_norm_fused(h2, ln2_ref[1:2, :], ln2_ref[2:3, :], HIDDEN2)
    h2 = jnp.maximum(h2, 0.0)

    # fused heads: one matmul for [critic | actor | sigma | pad]
    heads = jnp.dot(h2.astype(wdt), wh_ref[...], preferred_element_type=jnp.float32)
    heads = heads + bh_ref[...]

    # softplus only on the sigma columns (numerically stable logaddexp)
    col = jax.lax.broadcasted_iota(jnp.int32, heads.shape, 1)
    is_sigma = (col >= 1 + action_space) & (col < 1 + 2 * action_space)
    heads = jnp.where(is_sigma, jnp.logaddexp(heads, 0.0), heads)

    out_ref[...] = heads                    # one lane-dense (tm, 128) store


def pack_params(p, action_space, matmul_dtype=jnp.float32):
    """Pack 15 small tensors into 6 kernel operands (done once, outside hot path)."""
    A = action_space
    out = 1 + 2 * A
    assert out <= OUT_PAD

    w_heads = jnp.zeros((HIDDEN2, OUT_PAD), jnp.float32)
    w_heads = (w_heads.at[:, 0:1].set(p["wc"])
                       .at[:, 1:1 + A].set(p["wa"])
                       .at[:, 1 + A:out].set(p["ws"]))
    b_heads = jnp.zeros((1, OUT_PAD), jnp.float32)
    b_heads = (b_heads.at[:, 0:1].set(p["bc"])
                       .at[:, 1:1 + A].set(p["ba"])
                       .at[:, 1 + A:out].set(p["bs"]))

    ln1 = jnp.concatenate([p["b1"], p["g1"], p["be1"]], axis=0)  # [3, 256]
    ln2 = jnp.concatenate([p["b2"], p["g2"], p["be2"]], axis=0)  # [3, 128]

    # Only matmul operands may be downcast (e.g. bf16 on v6e); LN/bias stay f32.
    w1 = p["w1"].astype(matmul_dtype)
    w2 = p["w2"].astype(matmul_dtype)
    w_heads = w_heads.astype(matmul_dtype)
    return (w1, ln1, w2, ln2, w_heads, b_heads)


def actor_critic_forward(x, packed, action_space, *, block_m=256):
    w1, ln1, w2, ln2, wh, bh = packed
    B, d_in = x.shape
    A = action_space

    # batch tile: multiple of 8 sublanes, capped at block_m (256 fills v6e/v7x MXU)
    tm = min(block_m, _round_up(B, 8))
    b_pad = _round_up(B, tm)
    if b_pad != B:
        x = jnp.pad(x, ((0, b_pad - B), (0, 0)))
    grid = (b_pad // tm,)

    out = pl.pallas_call(
        functools.partial(actor_critic_kernel, action_space=A),
        out_shape=jax.ShapeDtypeStruct((b_pad, OUT_PAD), jnp.float32),
        grid_spec=pltpu.PrefetchScalarGridSpec(
            num_scalar_prefetch=0,
            grid=grid,
            in_specs=[
                pl.BlockSpec((tm, d_in), lambda i: (i, 0)),          # x tile
                pl.BlockSpec((d_in, HIDDEN1), lambda i: (0, 0)),     # w1 (resident)
                pl.BlockSpec((3, HIDDEN1), lambda i: (0, 0)),        # b1|g1|be1
                pl.BlockSpec((HIDDEN1, HIDDEN2), lambda i: (0, 0)),  # w2 (resident)
                pl.BlockSpec((3, HIDDEN2), lambda i: (0, 0)),        # b2|g2|be2
                pl.BlockSpec((HIDDEN2, OUT_PAD), lambda i: (0, 0)),  # fused head W
                pl.BlockSpec((1, OUT_PAD), lambda i: (0, 0)),        # fused head b
            ],
            out_specs=pl.BlockSpec((tm, OUT_PAD), lambda i: (i, 0)),
        ),
        compiler_params=pltpu.CompilerParams(
            dimension_semantics=("parallel",)),
    )(x, w1, ln1, w2, ln2, wh, bh)

    critic = out[:B, 0:1]
    actor = out[:B, 1:1 + A]
    sigma = out[:B, 1 + A:1 + 2 * A]
    return critic, actor, sigma


def init_params(key, num_inputs, action_space):
    """Deterministic synthetic parameters (PyTorch-like uniform fan-in init)."""
    def linear(key, fan_in, fan_out):
        k_w, k_b = jax.random.split(key)
        bound = 1.0 / np.sqrt(fan_in)
        # stored as [in, out] so the kernel computes x @ W
        w = jax.random.uniform(k_w, (fan_in, fan_out), jnp.float32, -bound, bound)
        b = jax.random.uniform(k_b, (1, fan_out), jnp.float32, -bound, bound)
        return w, b

    keys = jax.random.split(key, 5)
    p = {}
    p["w1"], p["b1"] = linear(keys[0], num_inputs, HIDDEN1)
    p["g1"] = jnp.ones((1, HIDDEN1), jnp.float32)
    p["be1"] = jnp.zeros((1, HIDDEN1), jnp.float32)
    p["w2"], p["b2"] = linear(keys[1], HIDDEN1, HIDDEN2)
    p["g2"] = jnp.ones((1, HIDDEN2), jnp.float32)
    p["be2"] = jnp.zeros((1, HIDDEN2), jnp.float32)
    p["wc"], p["bc"] = linear(keys[2], HIDDEN2, 1)
    p["wa"], p["ba"] = linear(keys[3], HIDDEN2, action_space)
    p["ws"], p["bs"] = linear(keys[4], HIDDEN2, action_space)
    return p


def reference_forward(x, p):
    """Pure-JAX reference for correctness checking."""
    def ln(h, g, b):
        m = jnp.mean(h, -1, keepdims=True)
        v = jnp.mean(jnp.square(h - m), -1, keepdims=True)
        return (h - m) / jnp.sqrt(v + LN_EPS) * g + b

    h = jnp.maximum(ln(x @ p["w1"] + p["b1"], p["g1"], p["be1"]), 0.0)
    h = jnp.maximum(ln(h @ p["w2"] + p["b2"], p["g2"], p["be2"]), 0.0)
    critic = h @ p["wc"] + p["bc"]
    actor = h @ p["wa"] + p["ba"]
    sigma = jax.nn.softplus(h @ p["ws"] + p["bs"])
    return critic, actor, sigma


if __name__ == "__main__":
    num_inputs = 32
    action_space = 4
    batch = 8

    key = jax.random.PRNGKey(0)
    k_params, k_x = jax.random.split(key)
    params = init_params(k_params, num_inputs, action_space)
    x = jax.random.normal(k_x, (batch, num_inputs), jnp.float32)

    # Pack once (amortized over all forward calls in a real RL loop).
    packed = pack_params(params, action_space)  # matmul_dtype=jnp.bfloat16 on v6e

    critic, actor, sigma = jax.block_until_ready(
        actor_critic_forward(x, packed, action_space))

    # sanity check against pure-JAX reference
    ref_c, ref_a, ref_s = reference_forward(x, params)
    np.testing.assert_allclose(np.asarray(critic), np.asarray(ref_c), rtol=1e-5, atol=2e-5)
    np.testing.assert_allclose(np.asarray(actor), np.asarray(ref_a), rtol=1e-5, atol=2e-5)
    np.testing.assert_allclose(np.asarray(sigma), np.asarray(ref_s), rtol=1e-5, atol=2e-5)

    assert critic.shape == (batch, 1)
    assert actor.shape == (batch, action_space)
    assert sigma.shape == (batch, action_space)

    print("KERNEL_OK")
</pallas_src>

<mosaic_0001>
module attributes {stable_mosaic.version = 11 : i64} {
  func.func @actor_critic_kernel(%arg0: i32, %arg1: memref<8x32xf32, #tpu.memory_space<vmem>>, %arg2: memref<32x256xf32, #tpu.memory_space<vmem>>, %arg3: memref<3x256xf32, #tpu.memory_space<vmem>>, %arg4: memref<256x128xf32, #tpu.memory_space<vmem>>, %arg5: memref<3x128xf32, #tpu.memory_space<vmem>>, %arg6: memref<128x128xf32, #tpu.memory_space<vmem>>, %arg7: memref<1x128xf32, #tpu.memory_space<vmem>>, %arg8: memref<8x128xf32, #tpu.memory_space<vmem>>) attributes {dimension_semantics = [#tpu.dimension_semantics<parallel>], iteration_bounds = array<i64: 1>, scalar_prefetch = 0 : i64, scratch_operands = 0 : i64, tpu.core_type = #tpu.core_type<tc>, window_params = [{transform_indices = @transform_0, window_bounds = array<i64: 8, 32>}, {pipeline_mode = #tpu.pipeline_mode<synchronous>, transform_indices = @transform_1, window_bounds = array<i64: 32, 256>}, {pipeline_mode = #tpu.pipeline_mode<synchronous>, transform_indices = @transform_2, window_bounds = array<i64: 3, 256>}, {pipeline_mode = #tpu.pipeline_mode<synchronous>, transform_indices = @transform_3, window_bounds = array<i64: 256, 128>}, {pipeline_mode = #tpu.pipeline_mode<synchronous>, transform_indices = @transform_4, window_bounds = array<i64: 3, 128>}, {pipeline_mode = #tpu.pipeline_mode<synchronous>, transform_indices = @transform_5, window_bounds = array<i64: 128, 128>}, {pipeline_mode = #tpu.pipeline_mode<synchronous>, transform_indices = @transform_6, window_bounds = array<i64: 1, 128>}, {transform_indices = @transform_7, window_bounds = array<i64: 8, 128>}]} {
    %c0 = arith.constant 0 : index
    %c0_0 = arith.constant 0 : index
    %0 = vector.load %arg1[%c0, %c0_0] : memref<8x32xf32, #tpu.memory_space<vmem>>, vector<8x32xf32>
    %c0_1 = arith.constant 0 : index
    %c0_2 = arith.constant 0 : index
    %1 = vector.load %arg2[%c0_1, %c0_2] : memref<32x256xf32, #tpu.memory_space<vmem>>, vector<32x256xf32>
    %cst = arith.constant dense<0.000000e+00> : vector<8x256xf32>
    %2 = tpu.matmul %0, %1, %cst {dimension_numbers = #tpu.dot_dimension_numbers<[1], [0], [0], [1], [0, 0, 1, 1], [], []>} : vector<8x32xf32>, vector<32x256xf32>, vector<8x256xf32> -> vector<8x256xf32>
    %c0_3 = arith.constant 0 : index
    %c0_4 = arith.constant 0 : index
    %3 = vector.load %arg3[%c0_3, %c0_4] : memref<3x256xf32, #tpu.memory_space<vmem>>, vector<1x256xf32>
    %4 = vector.broadcast %3 : vector<1x256xf32> to vector<8x256xf32>
    %5 = arith.addf %2, %4 : vector<8x256xf32>
    %c1 = arith.constant 1 : index
    %c0_5 = arith.constant 0 : index
    %6 = vector.load %arg3[%c1, %c0_5] : memref<3x256xf32, #tpu.memory_space<vmem>>, vector<1x256xf32>
    %c2 = arith.constant 2 : index
    %c0_6 = arith.constant 0 : index
    %7 = vector.load %arg3[%c2, %c0_6] : memref<3x256xf32, #tpu.memory_space<vmem>>, vector<1x256xf32>
    %cst_7 = arith.constant dense<0.000000e+00> : vector<8xf32>
    %8 = vector.multi_reduction <add>, %5, %cst_7 [1] : vector<8x256xf32> to vector<8xf32>
    %9 = vector.shape_cast %8 : vector<8xf32> to vector<8x1xf32>
    %10 = arith.mulf %5, %5 : vector<8x256xf32>
    %cst_8 = arith.constant dense<0.000000e+00> : vector<8xf32>
    %11 = vector.multi_reduction <add>, %10, %cst_8 [1] : vector<8x256xf32> to vector<8xf32>
    %12 = vector.shape_cast %11 : vector<8xf32> to vector<8x1xf32>
    %cst_9 = arith.constant 3.906250e-03 : f32
    %13 = vector.broadcast %cst_9 : f32 to vector<8x1xf32>
    %14 = arith.mulf %9, %13 : vector<8x1xf32>
    %cst_10 = arith.constant 3.906250e-03 : f32
    %15 = vector.broadcast %cst_10 : f32 to vector<8x1xf32>
    %16 = arith.mulf %12, %15 : vector<8x1xf32>
    %17 = arith.mulf %14, %14 : vector<8x1xf32>
    %18 = arith.subf %16, %17 : vector<8x1xf32>
    %cst_11 = arith.constant 9.99999974E-6 : f32
    %19 = vector.broadcast %cst_11 : f32 to vector<8x1xf32>
    %20 = arith.addf %18, %19 : vector<8x1xf32>
    %21 = math.rsqrt %20 : vector<8x1xf32>
    %22 = vector.broadcast %6 : vector<1x256xf32> to vector<8x256xf32>
    %23 = vector.broadcast %21 : vector<8x1xf32> to vector<8x256xf32>
    %24 = arith.mulf %22, %23 : vector<8x256xf32>
    %25 = arith.mulf %5, %24 : vector<8x256xf32>
    %26 = vector.broadcast %14 : vector<8x1xf32> to vector<8x256xf32>
    %27 = arith.mulf %26, %24 : vector<8x256xf32>
    %28 = vector.broadcast %7 : vector<1x256xf32> to vector<8x256xf32>
    %29 = arith.subf %28, %27 : vector<8x256xf32>
    %30 = arith.addf %25, %29 : vector<8x256xf32>
    %cst_12 = arith.constant 0.000000e+00 : f32
    %31 = vector.broadcast %cst_12 : f32 to vector<8x256xf32>
    %32 = arith.maximumf %30, %31 : vector<8x256xf32>
    %c0_13 = arith.constant 0 : index
    %c0_14 = arith.constant 0 : index
    %33 = vector.load %arg4[%c0_13, %c0_14] : memref<256x128xf32, #tpu.memory_space<vmem>>, vector<256x128xf32>
    %cst_15 = arith.constant dense<0.000000e+00> : vector<8x128xf32>
    %34 = tpu.matmul %32, %33, %cst_15 {dimension_numbers = #tpu.dot_dimension_numbers<[1], [0], [0], [1], [0, 0, 1, 1], [], []>} : vector<8x256xf32>, vector<256x128xf32>, vector<8x128xf32> -> vector<8x128xf32>
    %c0_16 = arith.constant 0 : index
    %c0_17 = arith.constant 0 : index
    %35 = vector.load %arg5[%c0_16, %c0_17] : memref<3x128xf32, #tpu.memory_space<vmem>>, vector<1x128xf32>
    %36 = vector.broadcast %35 : vector<1x128xf32> to vector<8x128xf32>
    %37 = arith.addf %34, %36 : vector<8x128xf32>
    %c1_18 = arith.constant 1 : index
    %c0_19 = arith.constant 0 : index
    %38 = vector.load %arg5[%c1_18, %c0_19] : memref<3x128xf32, #tpu.memory_space<vmem>>, vector<1x128xf32>
    %c2_20 = arith.constant 2 : index
    %c0_21 = arith.constant 0 : index
    %39 = vector.load %arg5[%c2_20, %c0_21] : memref<3x128xf32, #tpu.memory_space<vmem>>, vector<1x128xf32>
    %cst_22 = arith.constant dense<0.000000e+00> : vector<8xf32>
    %40 = vector.multi_reduction <add>, %37, %cst_22 [1] : vector<8x128xf32> to vector<8xf32>
    %41 = vector.shape_cast %40 : vector<8xf32> to vector<8x1xf32>
    %42 = arith.mulf %37, %37 : vector<8x128xf32>
    %cst_23 = arith.constant dense<0.000000e+00> : vector<8xf32>
    %43 = vector.multi_reduction <add>, %42, %cst_23 [1] : vector<8x128xf32> to vector<8xf32>
    %44 = vector.shape_cast %43 : vector<8xf32> to vector<8x1xf32>
    %cst_24 = arith.constant 7.812500e-03 : f32
    %45 = vector.broadcast %cst_24 : f32 to vector<8x1xf32>
    %46 = arith.mulf %41, %45 : vector<8x1xf32>
    %cst_25 = arith.constant 7.812500e-03 : f32
    %47 = vector.broadcast %cst_25 : f32 to vector<8x1xf32>
    %48 = arith.mulf %44, %47 : vector<8x1xf32>
    %49 = arith.mulf %46, %46 : vector<8x1xf32>
    %50 = arith.subf %48, %49 : vector<8x1xf32>
    %cst_26 = arith.constant 9.99999974E-6 : f32
    %51 = vector.broadcast %cst_26 : f32 to vector<8x1xf32>
    %52 = arith.addf %50, %51 : vector<8x1xf32>
    %53 = math.rsqrt %52 : vector<8x1xf32>
    %54 = vector.broadcast %38 : vector<1x128xf32> to vector<8x128xf32>
    %55 = vector.broadcast %53 : vector<8x1xf32> to vector<8x128xf32>
    %56 = arith.mulf %54, %55 : vector<8x128xf32>
    %57 = arith.mulf %37, %56 : vector<8x128xf32>
    %58 = vector.broadcast %46 : vector<8x1xf32> to vector<8x128xf32>
    %59 = arith.mulf %58, %56 : vector<8x128xf32>
    %60 = vector.broadcast %39 : vector<1x128xf32> to vector<8x128xf32>
    %61 = arith.subf %60, %59 : vector<8x128xf32>
    %62 = arith.addf %57, %61 : vector<8x128xf32>
    %cst_27 = arith.constant 0.000000e+00 : f32
    %63 = vector.broadcast %cst_27 : f32 to vector<8x128xf32>
    %64 = arith.maximumf %62, %63 : vector<8x128xf32>
    %c0_28 = arith.constant 0 : index
    %c0_29 = arith.constant 0 : index
    %65 = vector.load %arg6[%c0_28, %c0_29] : memref<128x128xf32, #tpu.memory_space<vmem>>, vector<128x128xf32>
    %cst_30 = arith.constant dense<0.000000e+00> : vector<8x128xf32>
    %66 = tpu.matmul %64, %65, %cst_30 {dimension_numbers = #tpu.dot_dimension_numbers<[1], [0], [0], [1], [0, 0, 1, 1], [], []>} : vector<8x128xf32>, vector<128x128xf32>, vector<8x128xf32> -> vector<8x128xf32>
    %c0_31 = arith.constant 0 : index
    %c0_32 = arith.constant 0 : index
    %67 = vector.load %arg7[%c0_31, %c0_32] : memref<1x128xf32, #tpu.memory_space<vmem>>, vector<1x128xf32>
    %68 = vector.broadcast %67 : vector<1x128xf32> to vector<8x128xf32>
    %69 = arith.addf %66, %68 : vector<8x128xf32>
    %70 = tpu.iota {dimensions = array<i32: 1>} : vector<8x128xi32>
    %c5_i32 = arith.constant 5 : i32
    %71 = vector.broadcast %c5_i32 : i32 to vector<8x128xi32>
    %72 = arith.cmpi sge, %70, %71 : vector<8x128xi32>
    %c9_i32 = arith.constant 9 : i32
    %73 = vector.broadcast %c9_i32 : i32 to vector<8x128xi32>
    %74 = arith.cmpi slt, %70, %73 : vector<8x128xi32>
    %75 = arith.andi %72, %74 : vector<8x128xi1>
    %cst_33 = arith.constant 0.000000e+00 : f32
    %76 = vector.broadcast %cst_33 : f32 to vector<8x128xf32>
    %77 = arith.maximumf %69, %76 : vector<8x128xf32>
    %78 = vector.broadcast %cst_33 : f32 to vector<8x128xf32>
    %79 = arith.subf %69, %78 : vector<8x128xf32>
    %80 = arith.cmpf one, %79, %79 : vector<8x128xf32>
    %81 = vector.broadcast %cst_33 : f32 to vector<8x128xf32>
    %82 = arith.addf %69, %81 : vector<8x128xf32>
    %83 = math.absf %79 : vector<8x128xf32>
    %cst_34 = arith.constant 0.000000e+00 : f32
    %84 = vector.broadcast %cst_34 : f32 to vector<8x128xf32>
    %85 = arith.subf %84, %83 : vector<8x128xf32>
    %86 = math.exp %85 : vector<8x128xf32>
    %87 = math.log1p %86 : vector<8x128xf32>
    %88 = arith.addf %77, %87 : vector<8x128xf32>
    %89 = arith.select %80, %82, %88 : vector<8x128xi1>, vector<8x128xf32>
    %90 = arith.select %75, %89, %69 : vector<8x128xi1>, vector<8x128xf32>
    %c0_35 = arith.constant 0 : index
    %c0_36 = arith.constant 0 : index
    %91 = vector.load %arg8[%c0_35, %c0_36] : memref<8x128xf32, #tpu.memory_space<vmem>>, vector<8x128xf32>
    tpu.vector_store %arg8[%c0_35, %c0_36], %90 {strides = array<i32>} : memref<8x128xf32, #tpu.memory_space<vmem>>, vector<8x128xf32>,
    return
  }
  func.func @transform_0(%arg0: i32) -> (i32, i32) {
    %c0_i32 = arith.constant 0 : i32
    %c0_i32_0 = arith.constant 0 : i32
    return %arg0, %c0_i32 : i32, i32
  }
  func.func @transform_1(%arg0: i32) -> (i32, i32) {
    %c0_i32 = arith.constant 0 : i32
    %c0_i32_0 = arith.constant 0 : i32
    %c0_i32_1 = arith.constant 0 : i32
    return %c0_i32, %c0_i32_0 : i32, i32
  }
  func.func @transform_2(%arg0: i32) -> (i32, i32) {
    %c0_i32 = arith.constant 0 : i32
    %c0_i32_0 = arith.constant 0 : i32
    %c0_i32_1 = arith.constant 0 : i32
    return %c0_i32, %c0_i32_0 : i32, i32
  }
  func.func @transform_3(%arg0: i32) -> (i32, i32) {
    %c0_i32 = arith.constant 0 : i32
    %c0_i32_0 = arith.constant 0 : i32
    %c0_i32_1 = arith.constant 0 : i32
    return %c0_i32, %c0_i32_0 : i32, i32
  }
  func.func @transform_4(%arg0: i32) -> (i32, i32) {
    %c0_i32 = arith.constant 0 : i32
    %c0_i32_0 = arith.constant 0 : i32
    %c0_i32_1 = arith.constant 0 : i32
    return %c0_i32, %c0_i32_0 : i32, i32
  }
  func.func @transform_5(%arg0: i32) -> (i32, i32) {
    %c0_i32 = arith.constant 0 : i32
    %c0_i32_0 = arith.constant 0 : i32
    %c0_i32_1 = arith.constant 0 : i32
    return %c0_i32, %c0_i32_0 : i32, i32
  }
  func.func @transform_6(%arg0: i32) -> (i32, i32) {
    %c0_i32 = arith.constant 0 : i32
    %c0_i32_0 = arith.constant 0 : i32
    %c0_i32_1 = arith.constant 0 : i32
    return %c0_i32, %c0_i32_0 : i32, i32
  }
  func.func @transform_7(%arg0: i32) -> (i32, i32) {
    %c0_i32 = arith.constant 0 : i32
    %c0_i32_0 = arith.constant 0 : i32
    return %arg0, %c0_i32 : i32, i32
  }
}

</mosaic_0001>

<llo_original>
// kernel: tpu_custom_call.1
$region0: #{tpu_custom_call.1}
  #allocation0 [shape = 'u32[]', space=smem, size = 0x4, offset = 0x4, fixed_abs, tag = 'smem constant byte address 0x4 - core index']
  #allocation1 [shape = 'u32[144,128]{1,0:T(1,128)}', space=vmem, size = 0x12000, scoped, tag = 'internal scratch']
  %s0 = inlined_call_operand.hbm [shape: f32[8,32], index: 0, kind: input, shape index: {}]
  %s1 = inlined_call_operand.hbm [shape: f32[32,256], index: 1, kind: input, shape index: {}]
  %s2 = inlined_call_operand.hbm [shape: f32[3,256], index: 2, kind: input, shape index: {}]
  %s3 = inlined_call_operand.hbm [shape: f32[256,128], index: 3, kind: input, shape index: {}]
  %s4 = inlined_call_operand.vmem [shape: f32[3,128], index: 4, kind: input, shape index: {}]
  %s5 = inlined_call_operand.hbm [shape: f32[128,128], index: 5, kind: input, shape index: {}]
  %s6 = inlined_call_operand.vmem [shape: f32[1,128], index: 6, kind: input, shape index: {}]
  %s7 = inlined_call_operand.hbm [shape: f32[8,128], index: 7, kind: output, shape index: {}]
  %s8 = sld [smem:[#allocation0]]
  $region58: #{tpu_custom_call.1} parent=0
    _
  %s10 = ssub.s32 1, %s8
  %s11 = scalar_select 0, %s10, %s8
  $region1: #{tpu_custom_call.1} parent=0
    #allocation2 [shape = 'u8[4096]{0}', space=vmem, size = 0x1000, scoped, tag = 'input window, operand 0, single buffered']
    #allocation3 [shape = 's32[1]{0}', space=sflag, size = 0x4, scoped, tag = 'scoped memory for tpu_custom_call.1']
    #allocation4 [shape = 's32[1]{0}', space=sflag, size = 0x4, scoped, tag = 'scoped memory for tpu_custom_call.1']
    #allocation5 [shape = 'u8[32768]{0}', space=vmem, size = 0x8000, scoped, tag = 'input window, operand 1, single buffered']
    #allocation6 [shape = 's32[1]{0}', space=sflag, size = 0x4, scoped, tag = 'scoped memory for tpu_custom_call.1']
    #allocation7 [shape = 'u8[4096]{0}', space=vmem, size = 0x1000, scoped, tag = 'input window, operand 2, single buffered']
    #allocation8 [shape = 'u8[131072]{0}', space=vmem, size = 0x20000, scoped, tag = 'input window, operand 3, single buffered']
    #allocation9 [shape = 's32[1]{0}', space=sflag, size = 0x4, scoped, tag = 'scoped memory for tpu_custom_call.1']
    #allocation10 [shape = 'u8[65536]{0}', space=vmem, size = 0x10000, scoped, tag = 'input window, operand 5, single buffered']
    #allocation11 [shape = 'u8[4096]{0}', space=vmem, size = 0x1000, scoped, tag = 'output window, operand 0, single buffered']
    %12 = vsyncpa [#allocation3], 0
    %13 = vsyncpa [#allocation6], 0
    %14 = vsyncpa [#allocation9], 0
    %15 = vsyncpa [#allocation4], 0
    // Predicated region
    $region2: #{tpu_custom_call.1} parent=1 // pred_check
      _
    $region3: #{tpu_custom_call.1} parent=1 // pred_check_branch
      %17 = sbr.rel (0) target = $region5
    $region4: #{tpu_custom_call.1} parent=1 // pred_region
      %s19 = ssub.s32 128, 128
      %20 = vsyncadd [#allocation3], %s19
      %s22 = sshll.u32 [#allocation2], 4
      %s23 = int_to_ptr.vmem [resolvable:$true] %s22
      %25 = dma.hbm_to_vmem [thread:$0]  %s0, 128, %s23, [#allocation3]
    $region5: #{tpu_custom_call.1} parent=1 // pred_fallthru
      _
    // Predicated region
    $region6: #{tpu_custom_call.1} parent=1 // pred_check
      _
    $region7: #{tpu_custom_call.1} parent=1 // pred_check_branch
      %27 = sbr.rel (0) target = $region9
    $region8: #{tpu_custom_call.1} parent=1 // pred_region
      %s29 = ssub.s32 1024, 1024
      %30 = vsyncadd [#allocation6], %s29
      %s31 = sshll.u32 [#allocation5], 4
      %s32 = int_to_ptr.vmem [resolvable:$true] %s31
      %37 = dma.hbm_to_vmem [thread:$0]  %s1, 1024, %s32, [#allocation6], 256, 256, 16
    $region9: #{tpu_custom_call.1} parent=1 // pred_fallthru
      _
    // Predicated region
    $region10: #{tpu_custom_call.1} parent=1 // pred_check
      _
    $region11: #{tpu_custom_call.1} parent=1 // pred_check_branch
      %39 = sbr.rel (0) target = $region13
    $region12: #{tpu_custom_call.1} parent=1 // pred_region
      %s41 = ssub.s32 128, 128
      %42 = vsyncadd [#allocation6], %s41
      %s44 = sshll.u32 [#allocation7], 4
      %s45 = int_to_ptr.vmem [resolvable:$true] %s44
      %47 = dma.hbm_to_vmem [thread:$0]  %s2, 128, %s45, [#allocation6]
    $region13: #{tpu_custom_call.1} parent=1 // pred_fallthru
      _
    // Predicated region
    $region14: #{tpu_custom_call.1} parent=1 // pred_check
      _
    $region15: #{tpu_custom_call.1} parent=1 // pred_check_branch
      %49 = sbr.rel (0) target = $region17
    $region16: #{tpu_custom_call.1} parent=1 // pred_region
      %s51 = ssub.s32 4096, 4096
      %52 = vsyncadd [#allocation9], %s51
      %s53 = sshll.u32 [#allocation8], 4
      %s54 = int_to_ptr.vmem [resolvable:$true] %s53
      %59 = dma.hbm_to_vmem [thread:$0]  %s3, 4096, %s54, [#allocation9], 128, 128, 8
    $region17: #{tpu_custom_call.1} parent=1 // pred_fallthru
      _
    // Predicated region
    $region18: #{tpu_custom_call.1} parent=1 // pred_check
      _
    $region19: #{tpu_custom_call.1} parent=1 // pred_check_branch
      %61 = sbr.rel (0) target = $region21
    $region20: #{tpu_custom_call.1} parent=1 // pred_region
      _
    $region21: #{tpu_custom_call.1} parent=1 // pred_fallthru
      _
    // Predicated region
    $region22: #{tpu_custom_call.1} parent=1 // pred_check
      _
    $region23: #{tpu_custom_call.1} parent=1 // pred_check_branch
      %63 = sbr.rel (0) target = $region25
    $region24: #{tpu_custom_call.1} parent=1 // pred_region
      %s65 = ssub.s32 2048, 2048
      %66 = vsyncadd [#allocation9], %s65
      %s67 = sshll.u32 [#allocation10], 4
      %s68 = int_to_ptr.vmem [resolvable:$true] %s67
      %73 = dma.hbm_to_vmem [thread:$0]  %s5, 2048, %s68, [#allocation9], 128, 128, 8
    $region25: #{tpu_custom_call.1} parent=1 // pred_fallthru
      _
    // Predicated region
    $region26: #{tpu_custom_call.1} parent=1 // pred_check
      _
    $region27: #{tpu_custom_call.1} parent=1 // pred_check_branch
      %75 = sbr.rel (0) target = $region29
    $region28: #{tpu_custom_call.1} parent=1 // pred_region
      _
    $region29: #{tpu_custom_call.1} parent=1 // pred_fallthru
      _
    // Predicated region
    $region30: #{tpu_custom_call.1} parent=1 // pred_check
      _
    $region31: #{tpu_custom_call.1} parent=1 // pred_check_branch
      %77 = sbr.rel (0) target = $region33
    $region32: #{tpu_custom_call.1} parent=1 // pred_region
      %78 = dma.done [#allocation3], 128
    $region33: #{tpu_custom_call.1} parent=1 // pred_fallthru
      _
    // Predicated region
    $region34: #{tpu_custom_call.1} parent=1 // pred_check
      _
    $region35: #{tpu_custom_call.1} parent=1 // pred_check_branch
      %80 = sbr.rel (0) target = $region37
    $region36: #{tpu_custom_call.1} parent=1 // pred_region
      %81 = dma.done [#allocation6], 1024
    $region37: #{tpu_custom_call.1} parent=1 // pred_fallthru
      _
    // Predicated region
    $region38: #{tpu_custom_call.1} parent=1 // pred_check
      _
    $region39: #{tpu_custom_call.1} parent=1 // pred_check_branch
      %83 = sbr.rel (0) target = $region41
    $region40: #{tpu_custom_call.1} parent=1 // pred_region
      %84 = dma.done [#allocation6], 128
    $region41: #{tpu_custom_call.1} parent=1 // pred_fallthru
      _
    // Predicated region
    $region42: #{tpu_custom_call.1} parent=1 // pred_check
      _
    $region43: #{tpu_custom_call.1} parent=1 // pred_check_branch
      %86 = sbr.rel (0) target = $region45
    $region44: #{tpu_custom_call.1} parent=1 // pred_region
      %87 = dma.done [#allocation9], 4096
    $region45: #{tpu_custom_call.1} parent=1 // pred_fallthru
      _
    // Predicated region
    $region46: #{tpu_custom_call.1} parent=1 // pred_check
      _
    $region47: #{tpu_custom_call.1} parent=1 // pred_check_branch
      %89 = sbr.rel (0) target = $region49
    $region48: #{tpu_custom_call.1} parent=1 // pred_region
      %90 = dma.done [#allocation9], 2048
    $region49: #{tpu_custom_call.1} parent=1 // pred_fallthru
      _
    %v91 = vld [vmem:[#allocation2] sm:$0xff]
    %v92 = vld [vmem:[#allocation5] sm:$0xff]
    %v93 = vld [vmem:[#allocation5 + $0x8] sm:$0xff]
    %v94 = vld [vmem:[#allocation5 + $0x10] sm:$0xff]
    %v95 = vld [vmem:[#allocation5 + $0x18] sm:$0xff]
    %v96 = vld [vmem:[#allocation5 + $0x20] sm:$0xff]
    %v97 = vld [vmem:[#allocation5 + $0x28] sm:$0xff]
    %v98 = vld [vmem:[#allocation5 + $0x30] sm:$0xff]
    %v99 = vld [vmem:[#allocation5 + $0x38] sm:$0xff]
    %v100 = vld [vmem:[#allocation7] ss:$4 sm:$0x3]
    %v102 = vlaneseq
    %v103 = vshrl.u32 %v102, 7
    %v104 = vsub.s32 0, %v103
    %v105 = vrot.slane %v100, %v104
    %v106 = vlaneseq
    %v107 = vshrl.u32 %v106, 7
    %v108 = vsub.s32 1, %v107
    %v109 = vrot.slane %v100, %v108
    %vm112 = vcmask 261120
    %v114 = vsel %vm112, %v91, 0
    %116 = vmatprep.subr.mxu0 %v93
    %117 = vmatpush1.msra.mxu0 %v92
    %118 = vmatprep.subr.mxu0 %v95
    %119 = vmatpush1.msra.mxu0 %v94
    %120 = vmatprep.subr.mxu0 %v97
    %121 = vmatpush1.msra.mxu0 %v96
    %122 = vmatprep.subr.mxu0 %v99
    %123 = vmatpush1.msra.mxu0 %v98
    %124 = vmatprep.subr.mxu0 0.0
    %125 = vmatpush1.msra.mxu0 0.0
    %126 = vmatprep.subr.mxu0 0.0
    %127 = vmatpush1.msra.mxu0 0.0
    %128 = vmatprep.subr.mxu0 0.0
    %129 = vmatpush1.msra.mxu0 0.0
    %130 = vmatprep.subr.mxu0 0.0
    %131 = vmatpush1.msra.mxu0 0.0
    %132 = vmatprep.subr.mxu0 0.0
    %133 = vmatpush1.msra.mxu0 0.0
    %134 = vmatprep.subr.mxu0 0.0
    %135 = vmatpush1.msra.mxu0 0.0
    %136 = vmatprep.subr.mxu0 0.0
    %137 = vmatpush1.msra.mxu0 0.0
    %138 = vmatprep.subr.mxu0 0.0
    %139 = vmatpush1.msra.mxu0 0.0
    %140 = vmatprep.subr.mxu0 0.0
    %141 = vmatpush1.msra.mxu0 0.0
    %142 = vmatprep.subr.mxu0 0.0
    %143 = vmatpush1.msra.mxu0 0.0
    %144 = vmatprep.subr.mxu0 0.0
    %145 = vmatpush1.msra.mxu0 0.0
    %146 = vmatprep.subr.mxu0 0.0
    %147 = vmatpush1.msra.mxu0 0.0
    %148 = vmatprep.subr.mxu0 0.0
    %149 = vmatpush1.msra.mxu0 0.0
    %150 = vmatprep.subr.mxu0 0.0
    %151 = vmatpush1.msra.mxu0 0.0
    %152 = vmatprep.subr.mxu0 0.0
    %153 = vmatpush1.msra.mxu0 0.0
    %154 = vmatprep.subr.mxu0 0.0
    %155 = vmatpush1.msra.mxu0 0.0
    %156 = vmatprep.subr.mxu0 0.0
    %157 = vmatpush1.msra.mxu0 0.0
    %158 = vmatprep.subr.mxu0 0.0
    %159 = vmatpush1.msra.mxu0 0.0
    %160 = vmatprep.subr.mxu0 0.0
    %161 = vmatpush1.msra.mxu0 0.0
    %162 = vmatprep.subr.mxu0 0.0
    %163 = vmatpush1.msra.mxu0 0.0
    %164 = vmatprep.subr.mxu0 0.0
    %165 = vmatpush1.msra.mxu0 0.0
    %166 = vmatprep.subr.mxu0 0.0
    %167 = vmatpush1.msra.mxu0 0.0
    %168 = vmatprep.subr.mxu0 0.0
    %169 = vmatpush1.msra.mxu0 0.0
    %170 = vmatprep.subr.mxu0 0.0
    %171 = vmatpush1.msra.mxu0 0.0
    %172 = vmatprep.subr.mxu0 0.0
    %173 = vmatpush1.msra.mxu0 0.0
    %174 = vmatprep.subr.mxu0 0.0
    %175 = vmatpush1.msra.mxu0 0.0
    %176 = vmatprep.subr.mxu0 0.0
    %177 = vmatpush1.msra.mxu0 0.0
    %178 = vmatprep.subr.mxu0 0.0
    %179 = vmatpush1.msra.mxu0 0.0
    %180 = vmatprep.mubr.f32.mxu0 0.0
    %181 = vmatmul.mubr.f32.gmra.mrb[0].mxu0 %v114
    %v182 = vpop.f32.mrb[0].mxu0
    %v183 = vadd.f32 %v105, %v182
    %v184 = vpop.f32.mrb[0].mxu0
    %v185 = vadd.f32 %v109, %v184
    %186 = vdwg.mxu0
    %s187 = scalar_lea.vmem [#allocation7], 1
    %v188 = vld [vmem:[%s187] ss:$4 sm:$0x3]
    %s189 = scalar_lea.vmem [#allocation7], 2
    %v190 = vld [vmem:[%s189] ss:$4 sm:$0x3]
    %v191 = vadd.f32 %v183, %v185
    %192 = vadd.xlane.f32.xlu0 %v191
    %v193 = vpop.xlane.xlu0 %192
    %v194 = vmul.f32 %v183, %v183
    %v195 = vmul.f32 %v185, %v185
    %v196 = vadd.f32 %v194, %v195
    %197 = vadd.xlane.f32.xlu0 %v196
    %v198 = vpop.xlane.xlu0 %197
    %v199 = vmul.f32 %v193, 0.00390625
    %v200 = vmul.f32 %v198, 0.00390625
    %v201 = vmul.f32 %v199, %v199
    %v202 = vsub.f32 %v200, %v201
    %v203 = vadd.f32 %v202, 1e-05
    %v204 = vrsqrt.pop %v203
    %v206 = vlaneseq
    %v207 = vshrl.u32 %v206, 7
    %v208 = vsub.s32 0, %v207
    %v209 = vrot.slane %v188, %v208
    %v210 = vlaneseq
    %v211 = vshrl.u32 %v210, 7
    %v212 = vsub.s32 1, %v211
    %v213 = vrot.slane %v188, %v212
    %v216 = vmul.f32 %v209, %v204
    %v217 = vmul.f32 %v213, %v204
    %v218 = vmul.f32 %v183, %v216
    %v219 = vmul.f32 %v185, %v217
    %v220 = vmul.f32 %v199, %v216
    %v221 = vmul.f32 %v199, %v217
    %v223 = vlaneseq
    %v224 = vshrl.u32 %v223, 7
    %v225 = vsub.s32 0, %v224
    %v226 = vrot.slane %v190, %v225
    %v227 = vlaneseq
    %v228 = vshrl.u32 %v227, 7
    %v229 = vsub.s32 1, %v228
    %v230 = vrot.slane %v190, %v229
    %v233 = vsub.f32 %v226, %v220
    %v234 = vsub.f32 %v230, %v221
    %v235 = vadd.f32 %v218, %v233
    %v236 = vadd.f32 %v219, %v234
    %v237 = vmax.f32 %v235, 0.0
    %v238 = vmax.f32 %v236, 0.0
    %v239 = vld [vmem:[#allocation8] sm:$0xff]
    %v240 = vld [vmem:[#allocation8 + $0x8] sm:$0xff]
    %v241 = vld [vmem:[#allocation8 + $0x10] sm:$0xff]
    %v242 = vld [vmem:[#allocation8 + $0x18] sm:$0xff]
    %v243 = vld [vmem:[#allocation8 + $0x20] sm:$0xff]
    %v244 = vld [vmem:[#allocation8 + $0x28] sm:$0xff]
    %v245 = vld [vmem:[#allocation8 + $0x30] sm:$0xff]
    %v246 = vld [vmem:[#allocation8 + $0x38] sm:$0xff]
    %v247 = vld [vmem:[#allocation8 + $0x40] sm:$0xff]
    %v248 = vld [vmem:[#allocation8 + $0x48] sm:$0xff]
    %v249 = vld [vmem:[#allocation8 + $0x50] sm:$0xff]
    %v250 = vld [vmem:[#allocation8 + $0x58] sm:$0xff]
    %v251 = vld [vmem:[#allocation8 + $0x60] sm:$0xff]
    %v252 = vld [vmem:[#allocation8 + $0x68] sm:$0xff]
    %v253 = vld [vmem:[#allocation8 + $0x70] sm:$0xff]
    %v254 = vld [vmem:[#allocation8 + $0x78] sm:$0xff]
    %v255 = vld [vmem:[#allocation8 + $0x80] sm:$0xff]
    %v256 = vld [vmem:[#allocation8 + $0x88] sm:$0xff]
    %v257 = vld [vmem:[#allocation8 + $0x90] sm:$0xff]
    %v258 = vld [vmem:[#allocation8 + $0x98] sm:$0xff]
    %v259 = vld [vmem:[#allocation8 + $0xa0] sm:$0xff]
    %v260 = vld [vmem:[#allocation8 + $0xa8] sm:$0xff]
    %v261 = vld [vmem:[#allocation8 + $0xb0] sm:$0xff]
    %v262 = vld [vmem:[#allocation8 + $0xb8] sm:$0xff]
    %v263 = vld [vmem:[#allocation8 + $0xc0] sm:$0xff]
    %v264 = vld [vmem:[#allocation8 + $0xc8] sm:$0xff]
    %v265 = vld [vmem:[#allocation8 + $0xd0] sm:$0xff]
    %v266 = vld [vmem:[#allocation8 + $0xd8] sm:$0xff]
    %v267 = vld [vmem:[#allocation8 + $0xe0] sm:$0xff]
    %v268 = vld [vmem:[#allocation8 + $0xe8] sm:$0xff]
    %v269 = vld [vmem:[#allocation8 + $0xf0] sm:$0xff]
    %v270 = vld [vmem:[#allocation8 + $0xf8] sm:$0xff]
    %v271 = vld [vmem:[%s4] sm:$0x1]
    %v272 = vlaneseq
    %v273 = vshrl.u32 %v272, 7
    %v274 = vsub.s32 0, %v273
    %v275 = vrot.slane %v271, %v274
    %276 = vmatprep.subr.mxu0 0.0
    %277 = vmatpush1.msra.mxu0 %v239
    %278 = vmatprep.subr.mxu0 0.0
    %279 = vmatpush1.msra.mxu0 %v240
    %280 = vmatprep.subr.mxu0 0.0
    %281 = vmatpush1.msra.mxu0 %v241
    %282 = vmatprep.subr.mxu0 0.0
    %283 = vmatpush1.msra.mxu0 %v242
    %284 = vmatprep.subr.mxu0 0.0
    %285 = vmatpush1.msra.mxu0 %v243
    %286 = vmatprep.subr.mxu0 0.0
    %287 = vmatpush1.msra.mxu0 %v244
    %288 = vmatprep.subr.mxu0 0.0
    %289 = vmatpush1.msra.mxu0 %v245
    %290 = vmatprep.subr.mxu0 0.0
    %291 = vmatpush1.msra.mxu0 %v246
    %292 = vmatprep.subr.mxu0 0.0
    %293 = vmatpush1.msra.mxu0 %v247
    %294 = vmatprep.subr.mxu0 0.0
    %295 = vmatpush1.msra.mxu0 %v248
    %296 = vmatprep.subr.mxu0 0.0
    %297 = vmatpush1.msra.mxu0 %v249
    %298 = vmatprep.subr.mxu0 0.0
    %299 = vmatpush1.msra.mxu0 %v250
    %300 = vmatprep.subr.mxu0 0.0
    %301 = vmatpush1.msra.mxu0 %v251
    %302 = vmatprep.subr.mxu0 0.0
    %303 = vmatpush1.msra.mxu0 %v252
    %304 = vmatprep.subr.mxu0 0.0
    %305 = vmatpush1.msra.mxu0 %v253
    %306 = vmatprep.subr.mxu0 0.0
    %307 = vmatpush1.msra.mxu0 %v254
    %308 = vmatprep.subr.mxu0 0.0
    %309 = vmatpush1.msra.mxu0 %v255
    %310 = vmatprep.subr.mxu0 0.0
    %311 = vmatpush1.msra.mxu0 %v256
    %312 = vmatprep.subr.mxu0 0.0
    %313 = vmatpush1.msra.mxu0 %v257
    %314 = vmatprep.subr.mxu0 0.0
    %315 = vmatpush1.msra.mxu0 %v258
    %316 = vmatprep.subr.mxu0 0.0
    %317 = vmatpush1.msra.mxu0 %v259
    %318 = vmatprep.subr.mxu0 0.0
    %319 = vmatpush1.msra.mxu0 %v260
    %320 = vmatprep.subr.mxu0 0.0
    %321 = vmatpush1.msra.mxu0 %v261
    %322 = vmatprep.subr.mxu0 0.0
    %323 = vmatpush1.msra.mxu0 %v262
    %324 = vmatprep.subr.mxu0 0.0
    %325 = vmatpush1.msra.mxu0 %v263
    %326 = vmatprep.subr.mxu0 0.0
    %327 = vmatpush1.msra.mxu0 %v264
    %328 = vmatprep.subr.mxu0 0.0
    %329 = vmatpush1.msra.mxu0 %v265
    %330 = vmatprep.subr.mxu0 0.0
    %331 = vmatpush1.msra.mxu0 %v266
    %332 = vmatprep.subr.mxu0 0.0
    %333 = vmatpush1.msra.mxu0 %v267
    %334 = vmatprep.subr.mxu0 0.0
    %335 = vmatpush1.msra.mxu0 %v268
    %336 = vmatprep.subr.mxu0 0.0
    %337 = vmatpush1.msra.mxu0 %v269
    %338 = vmatprep.subr.mxu0 0.0
    %339 = vmatpush1.msra.mxu0 %v270
    %340 = vmatprep.mubr.f32.mxu0 %v238
    %341 = vmatmul.mubr.f32.gmra.mrb[0].mxu0 %v237
    %v342 = vpop.f32.mrb[0].mxu0
    %v343 = vadd.f32 %v275, %v342
    %v344 = vpop.f32.mrb[0].mxu0
    %345 = vdwg.mxu0
    %v346 = vld [vmem:[%s4 + $0x1] sm:$0x1]
    %v347 = vld [vmem:[%s4 + $0x2] sm:$0x1]
    %348 = vadd.xlane.f32.xlu0 %v343
    %v349 = vpop.xlane.xlu0 %348
    %v350 = vmul.f32 %v343, %v343
    %351 = vadd.xlane.f32.xlu0 %v350
    %v352 = vpop.xlane.xlu0 %351
    %v353 = vmul.f32 %v349, 0.0078125
    %v354 = vmul.f32 %v352, 0.0078125
    %v355 = vmul.f32 %v353, %v353
    %v356 = vsub.f32 %v354, %v355
    %v357 = vadd.f32 %v356, 1e-05
    %v358 = vrsqrt.pop %v357
    %v359 = vlaneseq
    %v360 = vshrl.u32 %v359, 7
    %v361 = vsub.s32 0, %v360
    %v362 = vrot.slane %v346, %v361
    %v363 = vmul.f32 %v362, %v358
    %v364 = vmul.f32 %v343, %v363
    %v365 = vmul.f32 %v353, %v363
    %v366 = vlaneseq
    %v367 = vshrl.u32 %v366, 7
    %v368 = vsub.s32 0, %v367
    %v369 = vrot.slane %v347, %v368
    %v370 = vsub.f32 %v369, %v365
    %v371 = vadd.f32 %v364, %v370
    %v372 = vmax.f32 %v371, 0.0
    %v373 = vld [vmem:[#allocation10] sm:$0xff]
    %v374 = vld [vmem:[#allocation10 + $0x8] sm:$0xff]
    %v375 = vld [vmem:[#allocation10 + $0x10] sm:$0xff]
    %v376 = vld [vmem:[#allocation10 + $0x18] sm:$0xff]
    %v377 = vld [vmem:[#allocation10 + $0x20] sm:$0xff]
    %v378 = vld [vmem:[#allocation10 + $0x28] sm:$0xff]
    %v379 = vld [vmem:[#allocation10 + $0x30] sm:$0xff]
    %v380 = vld [vmem:[#allocation10 + $0x38] sm:$0xff]
    %v381 = vld [vmem:[#allocation10 + $0x40] sm:$0xff]
    %v382 = vld [vmem:[#allocation10 + $0x48] sm:$0xff]
    %v383 = vld [vmem:[#allocation10 + $0x50] sm:$0xff]
    %v384 = vld [vmem:[#allocation10 + $0x58] sm:$0xff]
    %v385 = vld [vmem:[#allocation10 + $0x60] sm:$0xff]
    %v386 = vld [vmem:[#allocation10 + $0x68] sm:$0xff]
    %v387 = vld [vmem:[#allocation10 + $0x70] sm:$0xff]
    %v388 = vld [vmem:[#allocation10 + $0x78] sm:$0xff]
    %v389 = vld [vmem:[%s6] sm:$0x1]
    %v391 = vlaneseq
    %v392 = vshrl.u32 %v391, 7
    %v393 = vsub.s32 0, %v392
    %v394 = vrot.slane %v389, %v393
    %396 = vmatprep.subr.mxu0 0.0
    %397 = vmatpush1.msra.mxu0 %v373
    %398 = vmatprep.subr.mxu0 0.0
    %399 = vmatpush1.msra.mxu0 %v374
    %400 = vmatprep.subr.mxu0 0.0
    %401 = vmatpush1.msra.mxu0 %v375
    %402 = vmatprep.subr.mxu0 0.0
    %403 = vmatpush1.msra.mxu0 %v376
    %404 = vmatprep.subr.mxu0 0.0
    %405 = vmatpush1.msra.mxu0 %v377
    %406 = vmatprep.subr.mxu0 0.0
    %407 = vmatpush1.msra.mxu0 %v378
    %408 = vmatprep.subr.mxu0 0.0
    %409 = vmatpush1.msra.mxu0 %v379
    %410 = vmatprep.subr.mxu0 0.0
    %411 = vmatpush1.msra.mxu0 %v380
    %412 = vmatprep.subr.mxu0 0.0
    %413 = vmatpush1.msra.mxu0 %v381
    %414 = vmatprep.subr.mxu0 0.0
    %415 = vmatpush1.msra.mxu0 %v382
    %416 = vmatprep.subr.mxu0 0.0
    %417 = vmatpush1.msra.mxu0 %v383
    %418 = vmatprep.subr.mxu0 0.0
    %419 = vmatpush1.msra.mxu0 %v384
    %420 = vmatprep.subr.mxu0 0.0
    %421 = vmatpush1.msra.mxu0 %v385
    %422 = vmatprep.subr.mxu0 0.0
    %423 = vmatpush1.msra.mxu0 %v386
    %424 = vmatprep.subr.mxu0 0.0
    %425 = vmatpush1.msra.mxu0 %v387
    %426 = vmatprep.subr.mxu0 0.0
    %427 = vmatpush1.msra.mxu0 %v388
    %428 = vmatprep.subr.mxu0 0.0
    %429 = vmatpush1.msra.mxu0 0.0
    %430 = vmatprep.subr.mxu0 0.0
    %431 = vmatpush1.msra.mxu0 0.0
    %432 = vmatprep.subr.mxu0 0.0
    %433 = vmatpush1.msra.mxu0 0.0
    %434 = vmatprep.subr.mxu0 0.0
    %435 = vmatpush1.msra.mxu0 0.0
    %436 = vmatprep.subr.mxu0 0.0
    %437 = vmatpush1.msra.mxu0 0.0
    %438 = vmatprep.subr.mxu0 0.0
    %439 = vmatpush1.msra.mxu0 0.0
    %440 = vmatprep.subr.mxu0 0.0
    %441 = vmatpush1.msra.mxu0 0.0
    %442 = vmatprep.subr.mxu0 0.0
    %443 = vmatpush1.msra.mxu0 0.0
    %444 = vmatprep.subr.mxu0 0.0
    %445 = vmatpush1.msra.mxu0 0.0
    %446 = vmatprep.subr.mxu0 0.0
    %447 = vmatpush1.msra.mxu0 0.0
    %448 = vmatprep.subr.mxu0 0.0
    %449 = vmatpush1.msra.mxu0 0.0
    %450 = vmatprep.subr.mxu0 0.0
    %451 = vmatpush1.msra.mxu0 0.0
    %452 = vmatprep.subr.mxu0 0.0
    %453 = vmatpush1.msra.mxu0 0.0
    %454 = vmatprep.subr.mxu0 0.0
    %455 = vmatpush1.msra.mxu0 0.0
    %456 = vmatprep.subr.mxu0 0.0
    %457 = vmatpush1.msra.mxu0 0.0
    %458 = vmatprep.subr.mxu0 0.0
    %459 = vmatpush1.msra.mxu0 0.0
    %460 = vmatprep.mubr.f32.mxu0 0.0
    %461 = vmatmul.mubr.f32.gmra.mrb[0].mxu0 %v372
    %v462 = vpop.f32.mrb[0].mxu0
    %v463 = vadd.f32 %v394, %v462
    %v464 = vpop.f32.mrb[0].mxu0
    %465 = vdwg.mxu0
    %v466 = vlaneseq
    %v467 = vand.u32 %v466, 127
    %vm468 = vcmp.ge.s32.totalorder %v467, 5
    %vm469 = vcmp.lt.s32.totalorder %v467, 9
    %vm470 = vmand %vm468, %vm469
    %v471 = vmax.f32 %v463, 0.0
    %vm472 = vcmp.ne.f32.partialorder %v463, %v463
    %v473 = vadd.f32 %v463, 0.0
    %v474 = vand.u32 2147483647, %v463
    %v475 = vsub.f32 0.0, %v474
    %v476 = vmul.f32 %v475, 1.442695
    %v477 = vpow.pop %v476
    %v478 = vadd.f32 %v477, 1.0
    %v479 = vlog2.pop %v478
    %v480 = vmul.f32 %v479, 0.6931472
    %v481 = vmul.f32 -0.5, %v477
    %v482 = vadd.f32 %v481, 1.0
    %v483 = vmul.f32 %v482, %v477
    %v484 = vand.u32 2147483647, %v477
    %vm485 = vcmp.lt.f32.partialorder %v484, 0.0004427343
    %v486 = vsel %vm485, %v483, %v480
    %v487 = vadd.f32 %v471, %v486
    %v488 = vsel %vm472, %v473, %v487
    %v489 = vsel %vm470, %v488, %v463
    %490 = vst [vmem:[#allocation11] sm:$0xff] %v489
    // Predicated region
    $region50: #{tpu_custom_call.1} parent=1 // pred_check
      _
    $region51: #{tpu_custom_call.1} parent=1 // pred_check_branch
      %492 = sbr.rel (0) target = $region53
    $region52: #{tpu_custom_call.1} parent=1 // pred_region
      %s494 = ssub.s32 128, 128
      %495 = vsyncadd [#allocation4], %s494
      %s497 = sshll.u32 [#allocation11], 4
      %s498 = int_to_ptr.vmem [resolvable:$true] %s497
      %500 = dma.vmem_to_hbm [thread:$0]  %s498, 128, %s7, [#allocation4]
    $region53: #{tpu_custom_call.1} parent=1 // pred_fallthru
      _
    // Predicated region
    $region54: #{tpu_custom_call.1} parent=1 // pred_check
      _
    $region55: #{tpu_custom_call.1} parent=1 // pred_check_branch
      %502 = sbr.rel (0) target = $region57
    $region56: #{tpu_custom_call.1} parent=1 // pred_region
      %503 = dma.done [#allocation4], 128
    $region57: #{tpu_custom_call.1} parent=1 // pred_fallthru
      _
    %504 = vsyncpa [#allocation3], 1
    %505 = vsyncpa [#allocation6], 1
    %506 = vsyncpa [#allocation9], 1
    %507 = vsyncpa [#allocation4], 1

</llo_original>
